<compile_context>
chip_gen: v7x
topology: tpu7x:2x2x1
jax: 0.10.0
libtpu: 0.0.40
codegen_flags: <defaults>
</compile_context>

<pallas_src>
import math

import jax
import jax.numpy as jnp
from jax.experimental import pallas as pl
from jax.experimental.pallas import tpu as pltpu

LANE = 128


def _round_up(n, m):
    return ((n + m - 1) // m) * m


def mlp_kernel(x_ref, *refs):
    """Fused MLP forward on one batch tile.

    refs = (w1, b1, ..., w5, b5, w_last_row, b_last, o_ref)
      * hidden layers: MXU matmul (operands may be bf16) with f32 accumulation,
        bias-add + ReLU in f32 on the VPU.
      * final width-1 layer: VPU multiply + lane reduce (no 128-wide matmul),
        sigmoid (EUP exp + approx reciprocal) on the (tb, 1) column only, then a
        transpose to the lane-dense (1, tb) output block.
    """
    o_ref = refs[-1]
    wb = refs[:-1]
    n_hidden = (len(wb) - 2) // 2

    h = x_ref[...]
    for i in range(n_hidden):
        w = wb[2 * i][...]
        b = wb[2 * i + 1][...]
        # MXU matmul; operand dtype (bf16 or f32) is decided by the wrapper,
        # accumulation is always f32.
        h = jnp.dot(h.astype(w.dtype), w, preferred_element_type=jnp.float32)
        h = jnp.maximum(h + b, 0.0)  # bias + ReLU in f32 (VPU)

    w_last = wb[-2][...]                                        # (1, d_p) f32 row
    b_last = wb[-1][...]                                        # (1, 1)  f32
    z = jnp.sum(h * w_last, axis=-1, keepdims=True) + b_last    # (tb, 1)
    s = pl.reciprocal(1.0 + jnp.exp(-z), approx=True)           # sigmoid, EUP only
    o_ref[...] = jnp.transpose(s).astype(o_ref.dtype)           # (1, tb) lane-dense


def anoshift_fc_forward(x, params, *, block_b=1024, matmul_bf16=True):
    """params: list of (W[in, out], b[1, out]) for the 6 linear layers
    (weights already transposed vs. PyTorch's nn.Linear [out, in] layout)."""
    B, d_in = x.shape
    mxu_dtype = jnp.bfloat16 if matmul_bf16 else jnp.float32

    # --- feature padding ---------------------------------------------------
    # Input features: do NOT pad to 128 (dominant streamed operand); only round
    # to a sublane multiple (no-op for d_in = 32).  Hidden dims -> multiples of 128.
    d_in_p = _round_up(d_in, 16)

    hidden_params, (w_last, b_last) = params[:-1], params[-1]
    padded = []
    for li, (w, b) in enumerate(hidden_params):
        fi, fo = w.shape
        fi_p = d_in_p if li == 0 else _round_up(fi, LANE)
        fo_p = _round_up(fo, LANE)
        w_p = jnp.zeros((fi_p, fo_p), jnp.float32).at[:fi, :fo].set(w.astype(jnp.float32))
        b_p = jnp.zeros((1, fo_p), jnp.float32).at[:, :fo].set(b.astype(jnp.float32))
        padded.append((w_p.astype(mxu_dtype), b_p))              # bias stays f32

    # Final (width-1) layer as a padded row vector for the VPU multiply + reduce.
    fi6, fo6 = w_last.shape                                       # (10, 1)
    fi6_p = _round_up(fi6, LANE)
    w_last_row = jnp.zeros((1, fi6_p), jnp.float32).at[0, :fi6].set(
        w_last[:, 0].astype(jnp.float32))
    b_last_sc = jnp.reshape(b_last.astype(jnp.float32), (1, 1))

    # --- batch tiling ------------------------------------------------------
    # The (1, B_pad) output is tiled (1, tb) along lanes, so multi-step tiles must
    # be multiples of 128.  Keep >= 2 grid steps when the batch allows (v7x has
    # 2 TensorCores and the "parallel" axis only shards over multiple steps).
    if B <= LANE:
        tb = _round_up(B, 16)            # single tile: block == full array
    else:
        tb = min(block_b, _round_up(B, LANE) // 2)
        tb = max(LANE, (tb // LANE) * LANE)
    B_pad = _round_up(B, tb)

    x_p = jnp.zeros((B_pad, d_in_p), jnp.float32).at[:B, :d_in].set(
        x.astype(jnp.float32)).astype(mxu_dtype)

    # --- specs ---------------------------------------------------------------
    flat_args = [x_p]
    in_specs = [pl.BlockSpec((tb, d_in_p), lambda i: (i, 0))]
    for w_p, b_p in padded:
        flat_args += [w_p, b_p]
        # Constant index_map -> weights/biases stay VMEM-resident across steps.
        in_specs += [pl.BlockSpec(w_p.shape, lambda i: (0, 0)),
                     pl.BlockSpec(b_p.shape, lambda i: (0, 0))]
    flat_args += [w_last_row, b_last_sc]
    in_specs += [pl.BlockSpec(w_last_row.shape, lambda i: (0, 0)),
                 pl.BlockSpec(b_last_sc.shape, lambda i: (0, 0))]

    cp_kwargs = dict(dimension_semantics=("parallel",))
    if tb >= 2048:
        # v5e's default scoped VMEM is 16 MiB; raise it for very large tiles.
        cp_kwargs["vmem_limit_bytes"] = 48 * 1024 * 1024

    out = pl.pallas_call(
        mlp_kernel,
        out_shape=jax.ShapeDtypeStruct((1, B_pad), jnp.float32),
        grid=(B_pad // tb,),
        in_specs=in_specs,
        out_specs=pl.BlockSpec((1, tb), lambda i: (0, i)),       # lane-dense output
        compiler_params=pltpu.CompilerParams(**cp_kwargs),
    )(*flat_args)

    return out[0, :B].reshape(B, 1)


def xavier_linear(key, fan_in, fan_out):
    """Matches the module's Xavier(): U(-a, a), a = sqrt(3)*sqrt(2/(fan_in+fan_out)),
    bias = 0.  Weight returned pre-transposed as [fan_in, fan_out]."""
    std = 1.0 * math.sqrt(2.0 / (fan_in + fan_out))
    a = math.sqrt(3.0) * std
    w = jax.random.uniform(key, (fan_in, fan_out),
                           minval=-a, maxval=a, dtype=jnp.float32)
    b = jnp.zeros((1, fan_out), dtype=jnp.float32)
    return w, b


def reference_forward(x, params):
    h = x
    for i, (w, b) in enumerate(params):
        h = h @ w + b
        if i < len(params) - 1:
            h = jnp.maximum(h, 0.0)
    return jax.nn.sigmoid(h)


if __name__ == "__main__":
    inputsize = 32
    batch = 8
    # ANOSHIFT_FC layer sizes (matches the PyTorch module spec).
    sizes = [inputsize, 100, 500, 150, 50, 10, 1]

    key = jax.random.PRNGKey(0)
    keys = jax.random.split(key, len(sizes))  # 1 key for x, 6 keys for layers

    x = jax.random.normal(keys[0], (batch, inputsize), dtype=jnp.float32)
    params = [xavier_linear(keys[i + 1], sizes[i], sizes[i + 1])
              for i in range(len(sizes) - 1)]

    out = anoshift_fc_forward(x, params)          # bf16 matmul operands (default)
    out = jax.block_until_ready(out)

    ref = reference_forward(x, params)            # f32 reference
    assert out.shape == (batch, 1), out.shape
    # bf16 matmul rounding (~4e-3 rel) + approx-reciprocal sigmoid (~1e-3) vs the
    # f32 reference -> modest tolerance.  Set matmul_bf16=False for tight f32 match.
    assert jnp.allclose(out, ref, atol=1e-2, rtol=1e-2), (out, ref)

    print("KERNEL_OK")
</pallas_src>

<mosaic_0001>
module attributes {stable_mosaic.version = 11 : i64} {
  func.func @mlp_kernel(%arg0: i32, %arg1: memref<16x32xbf16, #tpu.memory_space<vmem>>, %arg2: memref<32x128xbf16, #tpu.memory_space<vmem>>, %arg3: memref<1x128xf32, #tpu.memory_space<vmem>>, %arg4: memref<128x512xbf16, #tpu.memory_space<vmem>>, %arg5: memref<1x512xf32, #tpu.memory_space<vmem>>, %arg6: memref<512x256xbf16, #tpu.memory_space<vmem>>, %arg7: memref<1x256xf32, #tpu.memory_space<vmem>>, %arg8: memref<256x128xbf16, #tpu.memory_space<vmem>>, %arg9: memref<1x128xf32, #tpu.memory_space<vmem>>, %arg10: memref<128x128xbf16, #tpu.memory_space<vmem>>, %arg11: memref<1x128xf32, #tpu.memory_space<vmem>>, %arg12: memref<1x128xf32, #tpu.memory_space<vmem>>, %arg13: memref<1x1xf32, #tpu.memory_space<vmem>>, %arg14: memref<1x16xf32, #tpu.memory_space<vmem>>) attributes {dimension_semantics = [#tpu.dimension_semantics<parallel>], iteration_bounds = array<i64: 1>, scalar_prefetch = 0 : i64, scratch_operands = 0 : i64, tpu.core_type = #tpu.core_type<tc>, window_params = [{transform_indices = @transform_0, window_bounds = array<i64: 16, 32>}, {pipeline_mode = #tpu.pipeline_mode<synchronous>, transform_indices = @transform_1, window_bounds = array<i64: 32, 128>}, {pipeline_mode = #tpu.pipeline_mode<synchronous>, transform_indices = @transform_2, window_bounds = array<i64: 1, 128>}, {pipeline_mode = #tpu.pipeline_mode<synchronous>, transform_indices = @transform_3, window_bounds = array<i64: 128, 512>}, {pipeline_mode = #tpu.pipeline_mode<synchronous>, transform_indices = @transform_4, window_bounds = array<i64: 1, 512>}, {pipeline_mode = #tpu.pipeline_mode<synchronous>, transform_indices = @transform_5, window_bounds = array<i64: 512, 256>}, {pipeline_mode = #tpu.pipeline_mode<synchronous>, transform_indices = @transform_6, window_bounds = array<i64: 1, 256>}, {pipeline_mode = #tpu.pipeline_mode<synchronous>, transform_indices = @transform_7, window_bounds = array<i64: 256, 128>}, {pipeline_mode = #tpu.pipeline_mode<synchronous>, transform_indices = @transform_8, window_bounds = array<i64: 1, 128>}, {pipeline_mode = #tpu.pipeline_mode<synchronous>, transform_indices = @transform_9, window_bounds = array<i64: 128, 128>}, {pipeline_mode = #tpu.pipeline_mode<synchronous>, transform_indices = @transform_10, window_bounds = array<i64: 1, 128>}, {pipeline_mode = #tpu.pipeline_mode<synchronous>, transform_indices = @transform_11, window_bounds = array<i64: 1, 128>}, {pipeline_mode = #tpu.pipeline_mode<synchronous>, transform_indices = @transform_12, window_bounds = array<i64: 1, 1>}, {transform_indices = @transform_13, window_bounds = array<i64: 1, 16>}]} {
    %c0 = arith.constant 0 : index
    %c0_0 = arith.constant 0 : index
    %0 = vector.load %arg1[%c0, %c0_0] : memref<16x32xbf16, #tpu.memory_space<vmem>>, vector<16x32xbf16>
    %c0_1 = arith.constant 0 : index
    %c0_2 = arith.constant 0 : index
    %1 = vector.load %arg2[%c0_1, %c0_2] : memref<32x128xbf16, #tpu.memory_space<vmem>>, vector<32x128xbf16>
    %c0_3 = arith.constant 0 : index
    %c0_4 = arith.constant 0 : index
    %2 = vector.load %arg3[%c0_3, %c0_4] : memref<1x128xf32, #tpu.memory_space<vmem>>, vector<1x128xf32>
    %cst = arith.constant dense<0.000000e+00> : vector<16x128xf32>
    %3 = tpu.matmul %0, %1, %cst {dimension_numbers = #tpu.dot_dimension_numbers<[1], [0], [0], [1], [0, 0, 1, 1], [], []>} : vector<16x32xbf16>, vector<32x128xbf16>, vector<16x128xf32> -> vector<16x128xf32>
    %4 = vector.broadcast %2 : vector<1x128xf32> to vector<16x128xf32>
    %5 = arith.addf %3, %4 : vector<16x128xf32>
    %cst_5 = arith.constant 0.000000e+00 : f32
    %6 = vector.broadcast %cst_5 : f32 to vector<16x128xf32>
    %7 = arith.maximumf %5, %6 : vector<16x128xf32>
    %c0_6 = arith.constant 0 : index
    %c0_7 = arith.constant 0 : index
    %8 = vector.load %arg4[%c0_6, %c0_7] : memref<128x512xbf16, #tpu.memory_space<vmem>>, vector<128x512xbf16>
    %c0_8 = arith.constant 0 : index
    %c0_9 = arith.constant 0 : index
    %9 = vector.load %arg5[%c0_8, %c0_9] : memref<1x512xf32, #tpu.memory_space<vmem>>, vector<1x512xf32>
    %10 = arith.truncf %7 : vector<16x128xf32> to vector<16x128xbf16>
    %cst_10 = arith.constant dense<0.000000e+00> : vector<16x512xf32>
    %11 = tpu.matmul %10, %8, %cst_10 {dimension_numbers = #tpu.dot_dimension_numbers<[1], [0], [0], [1], [0, 0, 1, 1], [], []>} : vector<16x128xbf16>, vector<128x512xbf16>, vector<16x512xf32> -> vector<16x512xf32>
    %12 = vector.broadcast %9 : vector<1x512xf32> to vector<16x512xf32>
    %13 = arith.addf %11, %12 : vector<16x512xf32>
    %cst_11 = arith.constant 0.000000e+00 : f32
    %14 = vector.broadcast %cst_11 : f32 to vector<16x512xf32>
    %15 = arith.maximumf %13, %14 : vector<16x512xf32>
    %c0_12 = arith.constant 0 : index
    %c0_13 = arith.constant 0 : index
    %16 = vector.load %arg6[%c0_12, %c0_13] : memref<512x256xbf16, #tpu.memory_space<vmem>>, vector<512x256xbf16>
    %c0_14 = arith.constant 0 : index
    %c0_15 = arith.constant 0 : index
    %17 = vector.load %arg7[%c0_14, %c0_15] : memref<1x256xf32, #tpu.memory_space<vmem>>, vector<1x256xf32>
    %18 = arith.truncf %15 : vector<16x512xf32> to vector<16x512xbf16>
    %cst_16 = arith.constant dense<0.000000e+00> : vector<16x256xf32>
    %19 = tpu.matmul %18, %16, %cst_16 {dimension_numbers = #tpu.dot_dimension_numbers<[1], [0], [0], [1], [0, 0, 1, 1], [], []>} : vector<16x512xbf16>, vector<512x256xbf16>, vector<16x256xf32> -> vector<16x256xf32>
    %20 = vector.broadcast %17 : vector<1x256xf32> to vector<16x256xf32>
    %21 = arith.addf %19, %20 : vector<16x256xf32>
    %cst_17 = arith.constant 0.000000e+00 : f32
    %22 = vector.broadcast %cst_17 : f32 to vector<16x256xf32>
    %23 = arith.maximumf %21, %22 : vector<16x256xf32>
    %c0_18 = arith.constant 0 : index
    %c0_19 = arith.constant 0 : index
    %24 = vector.load %arg8[%c0_18, %c0_19] : memref<256x128xbf16, #tpu.memory_space<vmem>>, vector<256x128xbf16>
    %c0_20 = arith.constant 0 : index
    %c0_21 = arith.constant 0 : index
    %25 = vector.load %arg9[%c0_20, %c0_21] : memref<1x128xf32, #tpu.memory_space<vmem>>, vector<1x128xf32>
    %26 = arith.truncf %23 : vector<16x256xf32> to vector<16x256xbf16>
    %cst_22 = arith.constant dense<0.000000e+00> : vector<16x128xf32>
    %27 = tpu.matmul %26, %24, %cst_22 {dimension_numbers = #tpu.dot_dimension_numbers<[1], [0], [0], [1], [0, 0, 1, 1], [], []>} : vector<16x256xbf16>, vector<256x128xbf16>, vector<16x128xf32> -> vector<16x128xf32>
    %28 = vector.broadcast %25 : vector<1x128xf32> to vector<16x128xf32>
    %29 = arith.addf %27, %28 : vector<16x128xf32>
    %cst_23 = arith.constant 0.000000e+00 : f32
    %30 = vector.broadcast %cst_23 : f32 to vector<16x128xf32>
    %31 = arith.maximumf %29, %30 : vector<16x128xf32>
    %c0_24 = arith.constant 0 : index
    %c0_25 = arith.constant 0 : index
    %32 = vector.load %arg10[%c0_24, %c0_25] : memref<128x128xbf16, #tpu.memory_space<vmem>>, vector<128x128xbf16>
    %c0_26 = arith.constant 0 : index
    %c0_27 = arith.constant 0 : index
    %33 = vector.load %arg11[%c0_26, %c0_27] : memref<1x128xf32, #tpu.memory_space<vmem>>, vector<1x128xf32>
    %34 = arith.truncf %31 : vector<16x128xf32> to vector<16x128xbf16>
    %cst_28 = arith.constant dense<0.000000e+00> : vector<16x128xf32>
    %35 = tpu.matmul %34, %32, %cst_28 {dimension_numbers = #tpu.dot_dimension_numbers<[1], [0], [0], [1], [0, 0, 1, 1], [], []>} : vector<16x128xbf16>, vector<128x128xbf16>, vector<16x128xf32> -> vector<16x128xf32>
    %36 = vector.broadcast %33 : vector<1x128xf32> to vector<16x128xf32>
    %37 = arith.addf %35, %36 : vector<16x128xf32>
    %cst_29 = arith.constant 0.000000e+00 : f32
    %38 = vector.broadcast %cst_29 : f32 to vector<16x128xf32>
    %39 = arith.maximumf %37, %38 : vector<16x128xf32>
    %c0_30 = arith.constant 0 : index
    %c0_31 = arith.constant 0 : index
    %40 = vector.load %arg12[%c0_30, %c0_31] : memref<1x128xf32, #tpu.memory_space<vmem>>, vector<1x128xf32>
    %c0_32 = arith.constant 0 : index
    %c0_33 = arith.constant 0 : index
    %41 = vector.load %arg13[%c0_32, %c0_33] : memref<1x1xf32, #tpu.memory_space<vmem>>, vector<1x1xf32>
    %42 = vector.broadcast %40 : vector<1x128xf32> to vector<16x128xf32>
    %43 = arith.mulf %39, %42 : vector<16x128xf32>
    %cst_34 = arith.constant dense<0.000000e+00> : vector<16xf32>
    %44 = vector.multi_reduction <add>, %43, %cst_34 [1] : vector<16x128xf32> to vector<16xf32>
    %45 = vector.shape_cast %44 : vector<16xf32> to vector<16x1xf32>
    %46 = vector.broadcast %41 : vector<1x1xf32> to vector<16x1xf32>
    %47 = arith.addf %45, %46 : vector<16x1xf32>
    %cst_35 = arith.constant 0.000000e+00 : f32
    %48 = vector.broadcast %cst_35 : f32 to vector<16x1xf32>
    %49 = arith.subf %48, %47 : vector<16x1xf32>
    %50 = math.exp %49 : vector<16x1xf32>
    %cst_36 = arith.constant 1.000000e+00 : f32
    %51 = vector.broadcast %cst_36 : f32 to vector<16x1xf32>
    %52 = arith.addf %51, %50 : vector<16x1xf32>
    %53 = tpu.reciprocal %52 {approx = true} : vector<16x1xf32> -> vector<16x1xf32>
    %54 = tpu.transpose %53, [1, 0] : vector<16x1xf32> -> vector<1x16xf32>
    %c0_37 = arith.constant 0 : index
    %c0_38 = arith.constant 0 : index
    %55 = vector.load %arg14[%c0_37, %c0_38] : memref<1x16xf32, #tpu.memory_space<vmem>>, vector<1x16xf32>
    tpu.vector_store %arg14[%c0_37, %c0_38], %54 {strides = array<i32>} : memref<1x16xf32, #tpu.memory_space<vmem>>, vector<1x16xf32>,
    return
  }
  func.func @transform_0(%arg0: i32) -> (i32, i32) {
    %c0_i32 = arith.constant 0 : i32
    %c0_i32_0 = arith.constant 0 : i32
    return %arg0, %c0_i32 : i32, i32
  }
  func.func @transform_1(%arg0: i32) -> (i32, i32) {
    %c0_i32 = arith.constant 0 : i32
    %c0_i32_0 = arith.constant 0 : i32
    %c0_i32_1 = arith.constant 0 : i32
    return %c0_i32, %c0_i32_0 : i32, i32
  }
  func.func @transform_2(%arg0: i32) -> (i32, i32) {
    %c0_i32 = arith.constant 0 : i32
    %c0_i32_0 = arith.constant 0 : i32
    %c0_i32_1 = arith.constant 0 : i32
    return %c0_i32, %c0_i32_0 : i32, i32
  }
  func.func @transform_3(%arg0: i32) -> (i32, i32) {
    %c0_i32 = arith.constant 0 : i32
    %c0_i32_0 = arith.constant 0 : i32
    %c0_i32_1 = arith.constant 0 : i32
    return %c0_i32, %c0_i32_0 : i32, i32
  }
  func.func @transform_4(%arg0: i32) -> (i32, i32) {
    %c0_i32 = arith.constant 0 : i32
    %c0_i32_0 = arith.constant 0 : i32
    %c0_i32_1 = arith.constant 0 : i32
    return %c0_i32, %c0_i32_0 : i32, i32
  }
  func.func @transform_5(%arg0: i32) -> (i32, i32) {
    %c0_i32 = arith.constant 0 : i32
    %c0_i32_0 = arith.constant 0 : i32
    %c0_i32_1 = arith.constant 0 : i32
    return %c0_i32, %c0_i32_0 : i32, i32
  }
  func.func @transform_6(%arg0: i32) -> (i32, i32) {
    %c0_i32 = arith.constant 0 : i32
    %c0_i32_0 = arith.constant 0 : i32
    %c0_i32_1 = arith.constant 0 : i32
    return %c0_i32, %c0_i32_0 : i32, i32
  }
  func.func @transform_7(%arg0: i32) -> (i32, i32) {
    %c0_i32 = arith.constant 0 : i32
    %c0_i32_0 = arith.constant 0 : i32
    %c0_i32_1 = arith.constant 0 : i32
    return %c0_i32, %c0_i32_0 : i32, i32
  }
  func.func @transform_8(%arg0: i32) -> (i32, i32) {
    %c0_i32 = arith.constant 0 : i32
    %c0_i32_0 = arith.constant 0 : i32
    %c0_i32_1 = arith.constant 0 : i32
    return %c0_i32, %c0_i32_0 : i32, i32
  }
  func.func @transform_9(%arg0: i32) -> (i32, i32) {
    %c0_i32 = arith.constant 0 : i32
    %c0_i32_0 = arith.constant 0 : i32
    %c0_i32_1 = arith.constant 0 : i32
    return %c0_i32, %c0_i32_0 : i32, i32
  }
  func.func @transform_10(%arg0: i32) -> (i32, i32) {
    %c0_i32 = arith.constant 0 : i32
    %c0_i32_0 = arith.constant 0 : i32
    %c0_i32_1 = arith.constant 0 : i32
    return %c0_i32, %c0_i32_0 : i32, i32
  }
  func.func @transform_11(%arg0: i32) -> (i32, i32) {
    %c0_i32 = arith.constant 0 : i32
    %c0_i32_0 = arith.constant 0 : i32
    %c0_i32_1 = arith.constant 0 : i32
    return %c0_i32, %c0_i32_0 : i32, i32
  }
  func.func @transform_12(%arg0: i32) -> (i32, i32) {
    %c0_i32 = arith.constant 0 : i32
    %c0_i32_0 = arith.constant 0 : i32
    %c0_i32_1 = arith.constant 0 : i32
    return %c0_i32, %c0_i32_0 : i32, i32
  }
  func.func @transform_13(%arg0: i32) -> (i32, i32) {
    %c0_i32 = arith.constant 0 : i32
    %c0_i32_0 = arith.constant 0 : i32
    return %c0_i32, %arg0 : i32, i32
  }
}

</mosaic_0001>

<llo_original>
// kernel: tpu_custom_call.1
$region0: #{tpu_custom_call.1}
  #allocation0 [shape = 'u32[]', space=smem, size = 0x4, offset = 0x4, fixed_abs, tag = 'smem constant byte address 0x4 - core index']
  #allocation1 [shape = 'u32[144,128]{1,0:T(1,128)}', space=vmem, size = 0x12000, scoped, tag = 'internal scratch']
  #allocation2 [shape = 'f32[1,1]{1,0:T(1,128)S(1)}', space=vmem, size = 0x200, scoped, tag = 'scoped memory for tpu_custom_call.1']
  %s0 = inlined_call_operand.hbm [shape: bf16[16,32], index: 0, kind: input, shape index: {}]
  %s1 = inlined_call_operand.hbm [shape: bf16[32,128], index: 1, kind: input, shape index: {}]
  %s2 = inlined_call_operand.vmem [shape: f32[1,128], index: 2, kind: input, shape index: {}]
  %s3 = inlined_call_operand.hbm [shape: bf16[128,512], index: 3, kind: input, shape index: {}]
  %s4 = inlined_call_operand.vmem [shape: f32[1,512], index: 4, kind: input, shape index: {}]
  %s5 = inlined_call_operand.hbm [shape: bf16[512,256], index: 5, kind: input, shape index: {}]
  %s6 = inlined_call_operand.vmem [shape: f32[1,256], index: 6, kind: input, shape index: {}]
  %s7 = inlined_call_operand.hbm [shape: bf16[256,128], index: 7, kind: input, shape index: {}]
  %s8 = inlined_call_operand.vmem [shape: f32[1,128], index: 8, kind: input, shape index: {}]
  %s9 = inlined_call_operand.hbm [shape: bf16[128,128], index: 9, kind: input, shape index: {}]
  %s10 = inlined_call_operand.vmem [shape: f32[1,128], index: 10, kind: input, shape index: {}]
  %s11 = inlined_call_operand.vmem [shape: f32[1,128], index: 11, kind: input, shape index: {}]
  %s12 = inlined_call_operand.<no memory space> [shape: f32[1,1], index: 12, kind: input, shape index: {}]
  %s13 = inlined_call_operand.hbm [shape: f32[1,16], index: 13, kind: output, shape index: {}]
  %s14 = sld [smem:[#allocation0]]
  $region86: #{tpu_custom_call.1} parent=0
    _
  %s16 = ssub.s32 1, %s14
  %s17 = scalar_select 0, %s16, %s14
  %v18 = vstv %s12
  %19 = vst [vmem:[#allocation2] sm:$0x1] %v18
  $region1: #{tpu_custom_call.1} parent=0
    #allocation3 [shape = 'u8[4096]{0}', space=vmem, size = 0x1000, scoped, tag = 'input window, operand 0, single buffered']
    #allocation4 [shape = 's32[1]{0}', space=sflag, size = 0x4, scoped, tag = 'scoped memory for tpu_custom_call.1']
    #allocation5 [shape = 's32[1]{0}', space=sflag, size = 0x4, scoped, tag = 'scoped memory for tpu_custom_call.1']
    #allocation6 [shape = 'u8[8192]{0}', space=vmem, size = 0x2000, scoped, tag = 'input window, operand 1, single buffered']
    #allocation7 [shape = 's32[1]{0}', space=sflag, size = 0x4, scoped, tag = 'scoped memory for tpu_custom_call.1']
    #allocation8 [shape = 'u8[131072]{0}', space=vmem, size = 0x20000, scoped, tag = 'input window, operand 3, single buffered']
    #allocation9 [shape = 'u8[262144]{0}', space=vmem, size = 0x40000, scoped, tag = 'input window, operand 5, single buffered']
    #allocation10 [shape = 's32[1]{0}', space=sflag, size = 0x4, scoped, tag = 'scoped memory for tpu_custom_call.1']
    #allocation11 [shape = 'u8[65536]{0}', space=vmem, size = 0x10000, scoped, tag = 'input window, operand 7, single buffered']
    #allocation12 [shape = 'u8[32768]{0}', space=vmem, size = 0x8000, scoped, tag = 'input window, operand 9, single buffered']
    #allocation13 [shape = 's32[1]{0}', space=sflag, size = 0x4, scoped, tag = 'scoped memory for tpu_custom_call.1']
    #allocation14 [shape = 'u8[512]{0}', space=vmem, size = 0x400, scoped, tag = 'output window, operand 0, single buffered']
    %20 = vsyncpa [#allocation4], 0
    %21 = vsyncpa [#allocation7], 0
    %22 = vsyncpa [#allocation10], 0
    %23 = vsyncpa [#allocation13], 0
    %24 = vsyncpa [#allocation5], 0
    // Predicated region
    $region2: #{tpu_custom_call.1} parent=1 // pred_check
      _
    $region3: #{tpu_custom_call.1} parent=1 // pred_check_branch
      %26 = sbr.rel (0) target = $region5
    $region4: #{tpu_custom_call.1} parent=1 // pred_region
      %s28 = ssub.s32 128, 128
      %29 = vsyncadd [#allocation4], %s28
      %s30 = sshll.u32 [#allocation3], 4
      %s31 = int_to_ptr.vmem [resolvable:$true] %s30
      %36 = dma.hbm_to_vmem [thread:$0]  %s0, 128, %s31, [#allocation4], 64, 64, 4
    $region5: #{tpu_custom_call.1} parent=1 // pred_fallthru
      _
    // Predicated region
    $region6: #{tpu_custom_call.1} parent=1 // pred_check
      _
    $region7: #{tpu_custom_call.1} parent=1 // pred_check_branch
      %38 = sbr.rel (0) target = $region9
    $region8: #{tpu_custom_call.1} parent=1 // pred_region
      %s40 = ssub.s32 256, 256
      %41 = vsyncadd [#allocation7], %s40
      %s42 = sshll.u32 [#allocation6], 4
      %s43 = int_to_ptr.vmem [resolvable:$true] %s42
      %48 = dma.hbm_to_vmem [thread:$0]  %s1, 256, %s43, [#allocation7], 64, 64, 4
    $region9: #{tpu_custom_call.1} parent=1 // pred_fallthru
      _
    // Predicated region
    $region10: #{tpu_custom_call.1} parent=1 // pred_check
      _
    $region11: #{tpu_custom_call.1} parent=1 // pred_check_branch
      %50 = sbr.rel (0) target = $region13
    $region12: #{tpu_custom_call.1} parent=1 // pred_region
      _
    $region13: #{tpu_custom_call.1} parent=1 // pred_fallthru
      _
    // Predicated region
    $region14: #{tpu_custom_call.1} parent=1 // pred_check
      _
    $region15: #{tpu_custom_call.1} parent=1 // pred_check_branch
      %52 = sbr.rel (0) target = $region17
    $region16: #{tpu_custom_call.1} parent=1 // pred_region
      %s54 = ssub.s32 4096, 4096
      %55 = vsyncadd [#allocation7], %s54
      %s56 = sshll.u32 [#allocation8], 4
      %s57 = int_to_ptr.vmem [resolvable:$true] %s56
      %62 = dma.hbm_to_vmem [thread:$0]  %s3, 4096, %s57, [#allocation7], 256, 256, 16
    $region17: #{tpu_custom_call.1} parent=1 // pred_fallthru
      _
    // Predicated region
    $region18: #{tpu_custom_call.1} parent=1 // pred_check
      _
    $region19: #{tpu_custom_call.1} parent=1 // pred_check_branch
      %64 = sbr.rel (0) target = $region21
    $region20: #{tpu_custom_call.1} parent=1 // pred_region
      _
    $region21: #{tpu_custom_call.1} parent=1 // pred_fallthru
      _
    // Predicated region
    $region22: #{tpu_custom_call.1} parent=1 // pred_check
      _
    $region23: #{tpu_custom_call.1} parent=1 // pred_check_branch
      %66 = sbr.rel (0) target = $region25
    $region24: #{tpu_custom_call.1} parent=1 // pred_region
      %s68 = ssub.s32 8192, 8192
      %69 = vsyncadd [#allocation10], %s68
      %s70 = sshll.u32 [#allocation9], 4
      %s71 = int_to_ptr.vmem [resolvable:$true] %s70
      %76 = dma.hbm_to_vmem [thread:$0]  %s5, 8192, %s71, [#allocation10], 128, 128, 8
    $region25: #{tpu_custom_call.1} parent=1 // pred_fallthru
      _
    // Predicated region
    $region26: #{tpu_custom_call.1} parent=1 // pred_check
      _
    $region27: #{tpu_custom_call.1} parent=1 // pred_check_branch
      %78 = sbr.rel (0) target = $region29
    $region28: #{tpu_custom_call.1} parent=1 // pred_region
      _
    $region29: #{tpu_custom_call.1} parent=1 // pred_fallthru
      _
    // Predicated region
    $region30: #{tpu_custom_call.1} parent=1 // pred_check
      _
    $region31: #{tpu_custom_call.1} parent=1 // pred_check_branch
      %80 = sbr.rel (0) target = $region33
    $region32: #{tpu_custom_call.1} parent=1 // pred_region
      %s82 = ssub.s32 2048, 2048
      %83 = vsyncadd [#allocation10], %s82
      %s84 = sshll.u32 [#allocation11], 4
      %s85 = int_to_ptr.vmem [resolvable:$true] %s84
      %90 = dma.hbm_to_vmem [thread:$0]  %s7, 2048, %s85, [#allocation10], 64, 64, 4
    $region33: #{tpu_custom_call.1} parent=1 // pred_fallthru
      _
    // Predicated region
    $region34: #{tpu_custom_call.1} parent=1 // pred_check
      _
    $region35: #{tpu_custom_call.1} parent=1 // pred_check_branch
      %92 = sbr.rel (0) target = $region37
    $region36: #{tpu_custom_call.1} parent=1 // pred_region
      _
    $region37: #{tpu_custom_call.1} parent=1 // pred_fallthru
      _
    // Predicated region
    $region38: #{tpu_custom_call.1} parent=1 // pred_check
      _
    $region39: #{tpu_custom_call.1} parent=1 // pred_check_branch
      %94 = sbr.rel (0) target = $region41
    $region40: #{tpu_custom_call.1} parent=1 // pred_region
      %s96 = ssub.s32 1024, 1024
      %97 = vsyncadd [#allocation13], %s96
      %s98 = sshll.u32 [#allocation12], 4
      %s99 = int_to_ptr.vmem [resolvable:$true] %s98
      %104 = dma.hbm_to_vmem [thread:$0]  %s9, 1024, %s99, [#allocation13], 64, 64, 4
    $region41: #{tpu_custom_call.1} parent=1 // pred_fallthru
      _
    // Predicated region
    $region42: #{tpu_custom_call.1} parent=1 // pred_check
      _
    $region43: #{tpu_custom_call.1} parent=1 // pred_check_branch
      %106 = sbr.rel (0) target = $region45
    $region44: #{tpu_custom_call.1} parent=1 // pred_region
      _
    $region45: #{tpu_custom_call.1} parent=1 // pred_fallthru
      _
    // Predicated region
    $region46: #{tpu_custom_call.1} parent=1 // pred_check
      _
    $region47: #{tpu_custom_call.1} parent=1 // pred_check_branch
      %108 = sbr.rel (0) target = $region49
    $region48: #{tpu_custom_call.1} parent=1 // pred_region
      _
    $region49: #{tpu_custom_call.1} parent=1 // pred_fallthru
      _
    // Predicated region
    $region50: #{tpu_custom_call.1} parent=1 // pred_check
      _
    $region51: #{tpu_custom_call.1} parent=1 // pred_check_branch
      %110 = sbr.rel (0) target = $region53
    $region52: #{tpu_custom_call.1} parent=1 // pred_region
      _
    $region53: #{tpu_custom_call.1} parent=1 // pred_fallthru
      _
    // Predicated region
    $region54: #{tpu_custom_call.1} parent=1 // pred_check
      _
    $region55: #{tpu_custom_call.1} parent=1 // pred_check_branch
      %112 = sbr.rel (0) target = $region57
    $region56: #{tpu_custom_call.1} parent=1 // pred_region
      %113 = dma.done [#allocation4], 128
    $region57: #{tpu_custom_call.1} parent=1 // pred_fallthru
      _
    // Predicated region
    $region58: #{tpu_custom_call.1} parent=1 // pred_check
      _
    $region59: #{tpu_custom_call.1} parent=1 // pred_check_branch
      %115 = sbr.rel (0) target = $region61
    $region60: #{tpu_custom_call.1} parent=1 // pred_region
      %116 = dma.done [#allocation7], 256
    $region61: #{tpu_custom_call.1} parent=1 // pred_fallthru
      _
    // Predicated region
    $region62: #{tpu_custom_call.1} parent=1 // pred_check
      _
    $region63: #{tpu_custom_call.1} parent=1 // pred_check_branch
      %118 = sbr.rel (0) target = $region65
    $region64: #{tpu_custom_call.1} parent=1 // pred_region
      %119 = dma.done [#allocation7], 4096
    $region65: #{tpu_custom_call.1} parent=1 // pred_fallthru
      _
    // Predicated region
    $region66: #{tpu_custom_call.1} parent=1 // pred_check
      _
    $region67: #{tpu_custom_call.1} parent=1 // pred_check_branch
      %121 = sbr.rel (0) target = $region69
    $region68: #{tpu_custom_call.1} parent=1 // pred_region
      %122 = dma.done [#allocation10], 8192
    $region69: #{tpu_custom_call.1} parent=1 // pred_fallthru
      _
    // Predicated region
    $region70: #{tpu_custom_call.1} parent=1 // pred_check
      _
    $region71: #{tpu_custom_call.1} parent=1 // pred_check_branch
      %124 = sbr.rel (0) target = $region73
    $region72: #{tpu_custom_call.1} parent=1 // pred_region
      %125 = dma.done [#allocation10], 2048
    $region73: #{tpu_custom_call.1} parent=1 // pred_fallthru
      _
    // Predicated region
    $region74: #{tpu_custom_call.1} parent=1 // pred_check
      _
    $region75: #{tpu_custom_call.1} parent=1 // pred_check_branch
      %127 = sbr.rel (0) target = $region77
    $region76: #{tpu_custom_call.1} parent=1 // pred_region
      %128 = dma.done [#allocation13], 1024
    $region77: #{tpu_custom_call.1} parent=1 // pred_fallthru
      _
    %v130 = vld [vmem:[#allocation3] sm:$0xf]
    %v131 = vld [vmem:[#allocation3 + $0x4] sm:$0xf]
    %v132 = vld [vmem:[#allocation6] sm:$0xf]
    %v133 = vld [vmem:[#allocation6 + $0x4] sm:$0xf]
    %v134 = vld [vmem:[#allocation6 + $0x8] sm:$0xf]
    %v135 = vld [vmem:[#allocation6 + $0xc] sm:$0xf]
    %v136 = vld [vmem:[%s2] sm:$0x1]
    %v138 = vlaneseq
    %v139 = vshrl.u32 %v138, 7
    %v140 = vsub.s32 0, %v139
    %v141 = vrot.slane %v136, %v140
    %v145 = vunpack.c.l.b16 %v130
    %v146 = vunpack.c.l.b16 %v131
    %v147 = vpack.c.b16 %v146, %v145
    %v152 = vunpack.c.l.b16 %v132
    %v153 = vunpack.c.l.b16 %v133
    %v154 = vunpack.c.l.b16 %v134
    %v155 = vunpack.c.l.b16 %v135
    %v156 = vpack.c.b16 %v153, %v152
    %v157 = vpack.c.b16 %v155, %v154
    %vm160 = vcmask 261120
    %v162 = vsel %vm160, %v147, 0
    %164 = vmatprep.subr.bf16.mxu0 0
    %165 = vmatpush1.bf16.msra.mxu0 %v156
    %166 = vmatprep.subr.bf16.mxu0 0
    %167 = vmatpush1.bf16.msra.mxu0 %v157
    %168 = vmatprep.subr.bf16.mxu0 0
    %169 = vmatpush1.bf16.msra.mxu0 0
    %170 = vmatprep.subr.bf16.mxu0 0
    %171 = vmatpush1.bf16.msra.mxu0 0
    %172 = vmatprep.subr.bf16.mxu0 0
    %173 = vmatpush1.bf16.msra.mxu0 0
    %174 = vmatprep.subr.bf16.mxu0 0
    %175 = vmatpush1.bf16.msra.mxu0 0
    %176 = vmatprep.subr.bf16.mxu0 0
    %177 = vmatpush1.bf16.msra.mxu0 0
    %178 = vmatprep.subr.bf16.mxu0 0
    %179 = vmatpush1.bf16.msra.mxu0 0
    %180 = vmatprep.subr.bf16.mxu0 0
    %181 = vmatpush1.bf16.msra.mxu0 0
    %182 = vmatprep.subr.bf16.mxu0 0
    %183 = vmatpush1.bf16.msra.mxu0 0
    %184 = vmatprep.subr.bf16.mxu0 0
    %185 = vmatpush1.bf16.msra.mxu0 0
    %186 = vmatprep.subr.bf16.mxu0 0
    %187 = vmatpush1.bf16.msra.mxu0 0
    %188 = vmatprep.subr.bf16.mxu0 0
    %189 = vmatpush1.bf16.msra.mxu0 0
    %190 = vmatprep.subr.bf16.mxu0 0
    %191 = vmatpush1.bf16.msra.mxu0 0
    %192 = vmatprep.subr.bf16.mxu0 0
    %193 = vmatpush1.bf16.msra.mxu0 0
    %194 = vmatprep.subr.bf16.mxu0 0
    %195 = vmatpush1.bf16.msra.mxu0 0
    %196 = vmatprep.mubr.bf16.mxu0 0
    %197 = vmatmul.mubr.bf16.gmra.mrb[0].mxu0 %v162
    %v198 = vpop.f32.mrb[0].mxu0
    %v199 = vadd.f32 %v141, %v198
    %v200 = vpop.f32.mrb[0].mxu0
    %v201 = vpop.f32.mrb[0].mxu0
    %v202 = vadd.f32 %v141, %v201
    %v203 = vpop.f32.mrb[0].mxu0
    %204 = vdwg.mxu0
    %v205 = vmax.f32 %v199, 0.0
    %v206 = vmax.f32 %v202, 0.0
    %v207 = vld [vmem:[#allocation8] sm:$0xff]
    %v208 = vld [vmem:[#allocation8 + $0x8] sm:$0xff]
    %v209 = vld [vmem:[#allocation8 + $0x10] sm:$0xff]
    %v210 = vld [vmem:[#allocation8 + $0x18] sm:$0xff]
    %v211 = vld [vmem:[#allocation8 + $0x20] sm:$0xff]
    %v212 = vld [vmem:[#allocation8 + $0x28] sm:$0xff]
    %v213 = vld [vmem:[#allocation8 + $0x30] sm:$0xff]
    %v214 = vld [vmem:[#allocation8 + $0x38] sm:$0xff]
    %v215 = vld [vmem:[#allocation8 + $0x40] sm:$0xff]
    %v216 = vld [vmem:[#allocation8 + $0x48] sm:$0xff]
    %v217 = vld [vmem:[#allocation8 + $0x50] sm:$0xff]
    %v218 = vld [vmem:[#allocation8 + $0x58] sm:$0xff]
    %v219 = vld [vmem:[#allocation8 + $0x60] sm:$0xff]
    %v220 = vld [vmem:[#allocation8 + $0x68] sm:$0xff]
    %v221 = vld [vmem:[#allocation8 + $0x70] sm:$0xff]
    %v222 = vld [vmem:[#allocation8 + $0x78] sm:$0xff]
    %v223 = vld [vmem:[#allocation8 + $0x80] sm:$0xff]
    %v224 = vld [vmem:[#allocation8 + $0x88] sm:$0xff]
    %v225 = vld [vmem:[#allocation8 + $0x90] sm:$0xff]
    %v226 = vld [vmem:[#allocation8 + $0x98] sm:$0xff]
    %v227 = vld [vmem:[#allocation8 + $0xa0] sm:$0xff]
    %v228 = vld [vmem:[#allocation8 + $0xa8] sm:$0xff]
    %v229 = vld [vmem:[#allocation8 + $0xb0] sm:$0xff]
    %v230 = vld [vmem:[#allocation8 + $0xb8] sm:$0xff]
    %v231 = vld [vmem:[#allocation8 + $0xc0] sm:$0xff]
    %v232 = vld [vmem:[#allocation8 + $0xc8] sm:$0xff]
    %v233 = vld [vmem:[#allocation8 + $0xd0] sm:$0xff]
    %v234 = vld [vmem:[#allocation8 + $0xd8] sm:$0xff]
    %v235 = vld [vmem:[#allocation8 + $0xe0] sm:$0xff]
    %v236 = vld [vmem:[#allocation8 + $0xe8] sm:$0xff]
    %v237 = vld [vmem:[#allocation8 + $0xf0] sm:$0xff]
    %v238 = vld [vmem:[#allocation8 + $0xf8] sm:$0xff]
    %v239 = vld [vmem:[%s4] sm:$0xf]
    %v240 = vpack.c.bf16 %v206, %v205
    %v242 = vlaneseq
    %v243 = vshrl.u32 %v242, 7
    %v244 = vsub.s32 0, %v243
    %v245 = vrot.slane %v239, %v244
    %v246 = vlaneseq
    %v247 = vshrl.u32 %v246, 7
    %v248 = vsub.s32 1, %v247
    %v249 = vrot.slane %v239, %v248
    %v250 = vlaneseq
    %v251 = vshrl.u32 %v250, 7
    %v252 = vsub.s32 2, %v251
    %v253 = vrot.slane %v239, %v252
    %v254 = vlaneseq
    %v255 = vshrl.u32 %v254, 7
    %v256 = vsub.s32 3, %v255
    %v257 = vrot.slane %v239, %v256
    %v294 = vunpack.c.l.b16 %v207
    %v295 = vunpack.c.h.b16 %v207
    %v296 = vunpack.c.l.b16 %v208
    %v297 = vunpack.c.h.b16 %v208
    %v298 = vunpack.c.l.b16 %v209
    %v299 = vunpack.c.h.b16 %v209
    %v300 = vunpack.c.l.b16 %v210
    %v301 = vunpack.c.h.b16 %v210
    %v302 = vunpack.c.l.b16 %v211
    %v303 = vunpack.c.h.b16 %v211
    %v304 = vunpack.c.l.b16 %v212
    %v305 = vunpack.c.h.b16 %v212
    %v306 = vunpack.c.l.b16 %v213
    %v307 = vunpack.c.h.b16 %v213
    %v308 = vunpack.c.l.b16 %v214
    %v309 = vunpack.c.h.b16 %v214
    %v310 = vunpack.c.l.b16 %v215
    %v311 = vunpack.c.h.b16 %v215
    %v312 = vunpack.c.l.b16 %v216
    %v313 = vunpack.c.h.b16 %v216
    %v314 = vunpack.c.l.b16 %v217
    %v315 = vunpack.c.h.b16 %v217
    %v316 = vunpack.c.l.b16 %v218
    %v317 = vunpack.c.h.b16 %v218
    %v318 = vunpack.c.l.b16 %v219
    %v319 = vunpack.c.h.b16 %v219
    %v320 = vunpack.c.l.b16 %v220
    %v321 = vunpack.c.h.b16 %v220
    %v322 = vunpack.c.l.b16 %v221
    %v323 = vunpack.c.h.b16 %v221
    %v324 = vunpack.c.l.b16 %v222
    %v325 = vunpack.c.h.b16 %v222
    %v326 = vunpack.c.l.b16 %v223
    %v327 = vunpack.c.h.b16 %v223
    %v328 = vunpack.c.l.b16 %v224
    %v329 = vunpack.c.h.b16 %v224
    %v330 = vunpack.c.l.b16 %v225
    %v331 = vunpack.c.h.b16 %v225
    %v332 = vunpack.c.l.b16 %v226
    %v333 = vunpack.c.h.b16 %v226
    %v334 = vunpack.c.l.b16 %v227
    %v335 = vunpack.c.h.b16 %v227
    %v336 = vunpack.c.l.b16 %v228
    %v337 = vunpack.c.h.b16 %v228
    %v338 = vunpack.c.l.b16 %v229
    %v339 = vunpack.c.h.b16 %v229
    %v340 = vunpack.c.l.b16 %v230
    %v341 = vunpack.c.h.b16 %v230
    %v342 = vunpack.c.l.b16 %v231
    %v343 = vunpack.c.h.b16 %v231
    %v344 = vunpack.c.l.b16 %v232
    %v345 = vunpack.c.h.b16 %v232
    %v346 = vunpack.c.l.b16 %v233
    %v347 = vunpack.c.h.b16 %v233
    %v348 = vunpack.c.l.b16 %v234
    %v349 = vunpack.c.h.b16 %v234
    %v350 = vunpack.c.l.b16 %v235
    %v351 = vunpack.c.h.b16 %v235
    %v352 = vunpack.c.l.b16 %v236
    %v353 = vunpack.c.h.b16 %v236
    %v354 = vunpack.c.l.b16 %v237
    %v355 = vunpack.c.h.b16 %v237
    %v356 = vunpack.c.l.b16 %v238
    %v357 = vunpack.c.h.b16 %v238
    %v358 = vpack.c.b16 %v298, %v294
    %v359 = vpack.c.b16 %v299, %v295
    %v360 = vpack.c.b16 %v300, %v296
    %v361 = vpack.c.b16 %v301, %v297
    %v362 = vpack.c.b16 %v306, %v302
    %v363 = vpack.c.b16 %v307, %v303
    %v364 = vpack.c.b16 %v308, %v304
    %v365 = vpack.c.b16 %v309, %v305
    %v366 = vpack.c.b16 %v314, %v310
    %v367 = vpack.c.b16 %v315, %v311
    %v368 = vpack.c.b16 %v316, %v312
    %v369 = vpack.c.b16 %v317, %v313
    %v370 = vpack.c.b16 %v322, %v318
    %v371 = vpack.c.b16 %v323, %v319
    %v372 = vpack.c.b16 %v324, %v320
    %v373 = vpack.c.b16 %v325, %v321
    %v374 = vpack.c.b16 %v330, %v326
    %v375 = vpack.c.b16 %v331, %v327
    %v376 = vpack.c.b16 %v332, %v328
    %v377 = vpack.c.b16 %v333, %v329
    %v378 = vpack.c.b16 %v338, %v334
    %v379 = vpack.c.b16 %v339, %v335
    %v380 = vpack.c.b16 %v340, %v336
    %v381 = vpack.c.b16 %v341, %v337
    %v382 = vpack.c.b16 %v346, %v342
    %v383 = vpack.c.b16 %v347, %v343
    %v384 = vpack.c.b16 %v348, %v344
    %v385 = vpack.c.b16 %v349, %v345
    %v386 = vpack.c.b16 %v354, %v350
    %v387 = vpack.c.b16 %v355, %v351
    %v388 = vpack.c.b16 %v356, %v352
    %v389 = vpack.c.b16 %v357, %v353
    %422 = vmatprep.subr.bf16.mxu0 %v359
    %423 = vmatpush1.bf16.msra.mxu0 %v358
    %424 = vmatprep.subr.bf16.mxu0 %v363
    %425 = vmatpush1.bf16.msra.mxu0 %v362
    %426 = vmatprep.subr.bf16.mxu0 %v367
    %427 = vmatpush1.bf16.msra.mxu0 %v366
    %428 = vmatprep.subr.bf16.mxu0 %v371
    %429 = vmatpush1.bf16.msra.mxu0 %v370
    %430 = vmatprep.subr.bf16.mxu0 %v375
    %431 = vmatpush1.bf16.msra.mxu0 %v374
    %432 = vmatprep.subr.bf16.mxu0 %v379
    %433 = vmatpush1.bf16.msra.mxu0 %v378
    %434 = vmatprep.subr.bf16.mxu0 %v383
    %435 = vmatpush1.bf16.msra.mxu0 %v382
    %436 = vmatprep.subr.bf16.mxu0 %v387
    %437 = vmatpush1.bf16.msra.mxu0 %v386
    %438 = vmatprep.subr.bf16.mxu0 0
    %439 = vmatpush1.bf16.msra.mxu0 0
    %440 = vmatprep.subr.bf16.mxu0 0
    %441 = vmatpush1.bf16.msra.mxu0 0
    %442 = vmatprep.subr.bf16.mxu0 0
    %443 = vmatpush1.bf16.msra.mxu0 0
    %444 = vmatprep.subr.bf16.mxu0 0
    %445 = vmatpush1.bf16.msra.mxu0 0
    %446 = vmatprep.subr.bf16.mxu0 0
    %447 = vmatpush1.bf16.msra.mxu0 0
    %448 = vmatprep.subr.bf16.mxu0 0
    %449 = vmatpush1.bf16.msra.mxu0 0
    %450 = vmatprep.subr.bf16.mxu0 0
    %451 = vmatpush1.bf16.msra.mxu0 0
    %452 = vmatprep.subr.bf16.mxu0 0
    %453 = vmatpush1.bf16.msra.mxu0 0
    %454 = vmatprep.mubr.bf16.mxu0 0
    %455 = vmatmul.mubr.bf16.gmra.mrb[0].mxu0 %v240
    %v456 = vpop.f32.mrb[0].mxu0
    %v457 = vadd.f32 %v245, %v456
    %v458 = vpop.f32.mrb[0].mxu0
    %v459 = vadd.f32 %v249, %v458
    %v460 = vpop.f32.mrb[0].mxu0
    %v461 = vadd.f32 %v245, %v460
    %v462 = vpop.f32.mrb[0].mxu0
    %v463 = vadd.f32 %v249, %v462
    %464 = vdwg.mxu0
    %465 = vmatprep.subr.bf16.mxu0 %v361
    %466 = vmatpush1.bf16.msra.mxu0 %v360
    %467 = vmatprep.subr.bf16.mxu0 %v365
    %468 = vmatpush1.bf16.msra.mxu0 %v364
    %469 = vmatprep.subr.bf16.mxu0 %v369
    %470 = vmatpush1.bf16.msra.mxu0 %v368
    %471 = vmatprep.subr.bf16.mxu0 %v373
    %472 = vmatpush1.bf16.msra.mxu0 %v372
    %473 = vmatprep.subr.bf16.mxu0 %v377
    %474 = vmatpush1.bf16.msra.mxu0 %v376
    %475 = vmatprep.subr.bf16.mxu0 %v381
    %476 = vmatpush1.bf16.msra.mxu0 %v380
    %477 = vmatprep.subr.bf16.mxu0 %v385
    %478 = vmatpush1.bf16.msra.mxu0 %v384
    %479 = vmatprep.subr.bf16.mxu0 %v389
    %480 = vmatpush1.bf16.msra.mxu0 %v388
    %481 = vmatprep.subr.bf16.mxu0 0
    %482 = vmatpush1.bf16.msra.mxu0 0
    %483 = vmatprep.subr.bf16.mxu0 0
    %484 = vmatpush1.bf16.msra.mxu0 0
    %485 = vmatprep.subr.bf16.mxu0 0
    %486 = vmatpush1.bf16.msra.mxu0 0
    %487 = vmatprep.subr.bf16.mxu0 0
    %488 = vmatpush1.bf16.msra.mxu0 0
    %489 = vmatprep.subr.bf16.mxu0 0
    %490 = vmatpush1.bf16.msra.mxu0 0
    %491 = vmatprep.subr.bf16.mxu0 0
    %492 = vmatpush1.bf16.msra.mxu0 0
    %493 = vmatprep.subr.bf16.mxu0 0
    %494 = vmatpush1.bf16.msra.mxu0 0
    %495 = vmatprep.subr.bf16.mxu0 0
    %496 = vmatpush1.bf16.msra.mxu0 0
    %497 = vmatprep.mubr.bf16.mxu0 0
    %498 = vmatmul.mubr.bf16.gmra.mrb[0].mxu0 %v240
    %v499 = vpop.f32.mrb[0].mxu0
    %v500 = vadd.f32 %v253, %v499
    %v501 = vpop.f32.mrb[0].mxu0
    %v502 = vadd.f32 %v257, %v501
    %v503 = vpop.f32.mrb[0].mxu0
    %v504 = vadd.f32 %v253, %v503
    %v505 = vpop.f32.mrb[0].mxu0
    %v506 = vadd.f32 %v257, %v505
    %507 = vdwg.mxu0
    %v508 = vmax.f32 %v457, 0.0
    %v509 = vmax.f32 %v459, 0.0
    %v510 = vmax.f32 %v500, 0.0
    %v511 = vmax.f32 %v502, 0.0
    %v512 = vmax.f32 %v461, 0.0
    %v513 = vmax.f32 %v463, 0.0
    %v514 = vmax.f32 %v504, 0.0
    %v515 = vmax.f32 %v506, 0.0
    %v516 = vld [vmem:[#allocation9] sm:$0xff]
    %v517 = vld [vmem:[#allocation9 + $0x8] sm:$0xff]
    %v518 = vld [vmem:[#allocation9 + $0x10] sm:$0xff]
    %v519 = vld [vmem:[#allocation9 + $0x18] sm:$0xff]
    %v520 = vld [vmem:[#allocation9 + $0x20] sm:$0xff]
    %v521 = vld [vmem:[#allocation9 + $0x28] sm:$0xff]
    %v522 = vld [vmem:[#allocation9 + $0x30] sm:$0xff]
    %v523 = vld [vmem:[#allocation9 + $0x38] sm:$0xff]
    %v524 = vld [vmem:[#allocation9 + $0x40] sm:$0xff]
    %v525 = vld [vmem:[#allocation9 + $0x48] sm:$0xff]
    %v526 = vld [vmem:[#allocation9 + $0x50] sm:$0xff]
    %v527 = vld [vmem:[#allocation9 + $0x58] sm:$0xff]
    %v528 = vld [vmem:[#allocation9 + $0x60] sm:$0xff]
    %v529 = vld [vmem:[#allocation9 + $0x68] sm:$0xff]
    %v530 = vld [vmem:[#allocation9 + $0x70] sm:$0xff]
    %v531 = vld [vmem:[#allocation9 + $0x78] sm:$0xff]
    %v532 = vld [vmem:[#allocation9 + $0x80] sm:$0xff]
    %v533 = vld [vmem:[#allocation9 + $0x88] sm:$0xff]
    %v534 = vld [vmem:[#allocation9 + $0x90] sm:$0xff]
    %v535 = vld [vmem:[#allocation9 + $0x98] sm:$0xff]
    %v536 = vld [vmem:[#allocation9 + $0xa0] sm:$0xff]
    %v537 = vld [vmem:[#allocation9 + $0xa8] sm:$0xff]
    %v538 = vld [vmem:[#allocation9 + $0xb0] sm:$0xff]
    %v539 = vld [vmem:[#allocation9 + $0xb8] sm:$0xff]
    %v540 = vld [vmem:[#allocation9 + $0xc0] sm:$0xff]
    %v541 = vld [vmem:[#allocation9 + $0xc8] sm:$0xff]
    %v542 = vld [vmem:[#allocation9 + $0xd0] sm:$0xff]
    %v543 = vld [vmem:[#allocation9 + $0xd8] sm:$0xff]
    %v544 = vld [vmem:[#allocation9 + $0xe0] sm:$0xff]
    %v545 = vld [vmem:[#allocation9 + $0xe8] sm:$0xff]
    %v546 = vld [vmem:[#allocation9 + $0xf0] sm:$0xff]
    %v547 = vld [vmem:[#allocation9 + $0xf8] sm:$0xff]
    %v548 = vld [vmem:[#allocation9 + $0x100] sm:$0xff]
    %v549 = vld [vmem:[#allocation9 + $0x108] sm:$0xff]
    %v550 = vld [vmem:[#allocation9 + $0x110] sm:$0xff]
    %v551 = vld [vmem:[#allocation9 + $0x118] sm:$0xff]
    %v552 = vld [vmem:[#allocation9 + $0x120] sm:$0xff]
    %v553 = vld [vmem:[#allocation9 + $0x128] sm:$0xff]
    %v554 = vld [vmem:[#allocation9 + $0x130] sm:$0xff]
    %v555 = vld [vmem:[#allocation9 + $0x138] sm:$0xff]
    %v556 = vld [vmem:[#allocation9 + $0x140] sm:$0xff]
    %v557 = vld [vmem:[#allocation9 + $0x148] sm:$0xff]
    %v558 = vld [vmem:[#allocation9 + $0x150] sm:$0xff]
    %v559 = vld [vmem:[#allocation9 + $0x158] sm:$0xff]
    %v560 = vld [vmem:[#allocation9 + $0x160] sm:$0xff]
    %v561 = vld [vmem:[#allocation9 + $0x168] sm:$0xff]
    %v562 = vld [vmem:[#allocation9 + $0x170] sm:$0xff]
    %v563 = vld [vmem:[#allocation9 + $0x178] sm:$0xff]
    %v564 = vld [vmem:[#allocation9 + $0x180] sm:$0xff]
    %v565 = vld [vmem:[#allocation9 + $0x188] sm:$0xff]
    %v566 = vld [vmem:[#allocation9 + $0x190] sm:$0xff]
    %v567 = vld [vmem:[#allocation9 + $0x198] sm:$0xff]
    %v568 = vld [vmem:[#allocation9 + $0x1a0] sm:$0xff]
    %v569 = vld [vmem:[#allocation9 + $0x1a8] sm:$0xff]
    %v570 = vld [vmem:[#allocation9 + $0x1b0] sm:$0xff]
    %v571 = vld [vmem:[#allocation9 + $0x1b8] sm:$0xff]
    %v572 = vld [vmem:[#allocation9 + $0x1c0] sm:$0xff]
    %v573 = vld [vmem:[#allocation9 + $0x1c8] sm:$0xff]
    %v574 = vld [vmem:[#allocation9 + $0x1d0] sm:$0xff]
    %v575 = vld [vmem:[#allocation9 + $0x1d8] sm:$0xff]
    %v576 = vld [vmem:[#allocation9 + $0x1e0] sm:$0xff]
    %v577 = vld [vmem:[#allocation9 + $0x1e8] sm:$0xff]
    %v578 = vld [vmem:[#allocation9 + $0x1f0] sm:$0xff]
    %v579 = vld [vmem:[#allocation9 + $0x1f8] sm:$0xff]
    %v580 = vld [vmem:[%s6] sm:$0x3]
    %v581 = vpack.c.bf16 %v512, %v508
    %v582 = vpack.c.bf16 %v513, %v509
    %v583 = vpack.c.bf16 %v514, %v510
    %v584 = vpack.c.bf16 %v515, %v511
    %v586 = vlaneseq
    %v587 = vshrl.u32 %v586, 7
    %v588 = vsub.s32 0, %v587
    %v589 = vrot.slane %v580, %v588
    %v590 = vlaneseq
    %v591 = vshrl.u32 %v590, 7
    %v592 = vsub.s32 1, %v591
    %v593 = vrot.slane %v580, %v592
    %v660 = vunpack.c.l.b16 %v516
    %v661 = vunpack.c.h.b16 %v516
    %v662 = vunpack.c.l.b16 %v517
    %v663 = vunpack.c.h.b16 %v517
    %v664 = vunpack.c.l.b16 %v518
    %v665 = vunpack.c.h.b16 %v518
    %v666 = vunpack.c.l.b16 %v519
    %v667 = vunpack.c.h.b16 %v519
    %v668 = vunpack.c.l.b16 %v520
    %v669 = vunpack.c.h.b16 %v520
    %v670 = vunpack.c.l.b16 %v521
    %v671 = vunpack.c.h.b16 %v521
    %v672 = vunpack.c.l.b16 %v522
    %v673 = vunpack.c.h.b16 %v522
    %v674 = vunpack.c.l.b16 %v523
    %v675 = vunpack.c.h.b16 %v523
    %v676 = vunpack.c.l.b16 %v524
    %v677 = vunpack.c.h.b16 %v524
    %v678 = vunpack.c.l.b16 %v525
    %v679 = vunpack.c.h.b16 %v525
    %v680 = vunpack.c.l.b16 %v526
    %v681 = vunpack.c.h.b16 %v526
    %v682 = vunpack.c.l.b16 %v527
    %v683 = vunpack.c.h.b16 %v527
    %v684 = vunpack.c.l.b16 %v528
    %v685 = vunpack.c.h.b16 %v528
    %v686 = vunpack.c.l.b16 %v529
    %v687 = vunpack.c.h.b16 %v529
    %v688 = vunpack.c.l.b16 %v530
    %v689 = vunpack.c.h.b16 %v530
    %v690 = vunpack.c.l.b16 %v531
    %v691 = vunpack.c.h.b16 %v531
    %v692 = vunpack.c.l.b16 %v532
    %v693 = vunpack.c.h.b16 %v532
    %v694 = vunpack.c.l.b16 %v533
    %v695 = vunpack.c.h.b16 %v533
    %v696 = vunpack.c.l.b16 %v534
    %v697 = vunpack.c.h.b16 %v534
    %v698 = vunpack.c.l.b16 %v535
    %v699 = vunpack.c.h.b16 %v535
    %v700 = vunpack.c.l.b16 %v536
    %v701 = vunpack.c.h.b16 %v536
    %v702 = vunpack.c.l.b16 %v537
    %v703 = vunpack.c.h.b16 %v537
    %v704 = vunpack.c.l.b16 %v538
    %v705 = vunpack.c.h.b16 %v538
    %v706 = vunpack.c.l.b16 %v539
    %v707 = vunpack.c.h.b16 %v539
    %v708 = vunpack.c.l.b16 %v540
    %v709 = vunpack.c.h.b16 %v540
    %v710 = vunpack.c.l.b16 %v541
    %v711 = vunpack.c.h.b16 %v541
    %v712 = vunpack.c.l.b16 %v542
    %v713 = vunpack.c.h.b16 %v542
    %v714 = vunpack.c.l.b16 %v543
    %v715 = vunpack.c.h.b16 %v543
    %v716 = vunpack.c.l.b16 %v544
    %v717 = vunpack.c.h.b16 %v544
    %v718 = vunpack.c.l.b16 %v545
    %v719 = vunpack.c.h.b16 %v545
    %v720 = vunpack.c.l.b16 %v546
    %v721 = vunpack.c.h.b16 %v546
    %v722 = vunpack.c.l.b16 %v547
    %v723 = vunpack.c.h.b16 %v547
    %v724 = vunpack.c.l.b16 %v548
    %v725 = vunpack.c.h.b16 %v548
    %v726 = vunpack.c.l.b16 %v549
    %v727 = vunpack.c.h.b16 %v549
    %v728 = vunpack.c.l.b16 %v550
    %v729 = vunpack.c.h.b16 %v550
    %v730 = vunpack.c.l.b16 %v551
    %v731 = vunpack.c.h.b16 %v551
    %v732 = vunpack.c.l.b16 %v552
    %v733 = vunpack.c.h.b16 %v552
    %v734 = vunpack.c.l.b16 %v553
    %v735 = vunpack.c.h.b16 %v553
    %v736 = vunpack.c.l.b16 %v554
    %v737 = vunpack.c.h.b16 %v554
    %v738 = vunpack.c.l.b16 %v555
    %v739 = vunpack.c.h.b16 %v555
    %v740 = vunpack.c.l.b16 %v556
    %v741 = vunpack.c.h.b16 %v556
    %v742 = vunpack.c.l.b16 %v557
    %v743 = vunpack.c.h.b16 %v557
    %v744 = vunpack.c.l.b16 %v558
    %v745 = vunpack.c.h.b16 %v558
    %v746 = vunpack.c.l.b16 %v559
    %v747 = vunpack.c.h.b16 %v559
    %v748 = vunpack.c.l.b16 %v560
    %v749 = vunpack.c.h.b16 %v560
    %v750 = vunpack.c.l.b16 %v561
    %v751 = vunpack.c.h.b16 %v561
    %v752 = vunpack.c.l.b16 %v562
    %v753 = vunpack.c.h.b16 %v562
    %v754 = vunpack.c.l.b16 %v563
    %v755 = vunpack.c.h.b16 %v563
    %v756 = vunpack.c.l.b16 %v564
    %v757 = vunpack.c.h.b16 %v564
    %v758 = vunpack.c.l.b16 %v565
    %v759 = vunpack.c.h.b16 %v565
    %v760 = vunpack.c.l.b16 %v566
    %v761 = vunpack.c.h.b16 %v566
    %v762 = vunpack.c.l.b16 %v567
    %v763 = vunpack.c.h.b16 %v567
    %v764 = vunpack.c.l.b16 %v568
    %v765 = vunpack.c.h.b16 %v568
    %v766 = vunpack.c.l.b16 %v569
    %v767 = vunpack.c.h.b16 %v569
    %v768 = vunpack.c.l.b16 %v570
    %v769 = vunpack.c.h.b16 %v570
    %v770 = vunpack.c.l.b16 %v571
    %v771 = vunpack.c.h.b16 %v571
    %v772 = vunpack.c.l.b16 %v572
    %v773 = vunpack.c.h.b16 %v572
    %v774 = vunpack.c.l.b16 %v573
    %v775 = vunpack.c.h.b16 %v573
    %v776 = vunpack.c.l.b16 %v574
    %v777 = vunpack.c.h.b16 %v574
    %v778 = vunpack.c.l.b16 %v575
    %v779 = vunpack.c.h.b16 %v575
    %v780 = vunpack.c.l.b16 %v576
    %v781 = vunpack.c.h.b16 %v576
    %v782 = vunpack.c.l.b16 %v577
    %v783 = vunpack.c.h.b16 %v577
    %v784 = vunpack.c.l.b16 %v578
    %v785 = vunpack.c.h.b16 %v578
    %v786 = vunpack.c.l.b16 %v579
    %v787 = vunpack.c.h.b16 %v579
    %v788 = vpack.c.b16 %v662, %v660
    %v789 = vpack.c.b16 %v663, %v661
    %v790 = vpack.c.b16 %v666, %v664
    %v791 = vpack.c.b16 %v667, %v665
    %v792 = vpack.c.b16 %v670, %v668
    %v793 = vpack.c.b16 %v671, %v669
    %v794 = vpack.c.b16 %v674, %v672
    %v795 = vpack.c.b16 %v675, %v673
    %v796 = vpack.c.b16 %v678, %v676
    %v797 = vpack.c.b16 %v679, %v677
    %v798 = vpack.c.b16 %v682, %v680
    %v799 = vpack.c.b16 %v683, %v681
    %v800 = vpack.c.b16 %v686, %v684
    %v801 = vpack.c.b16 %v687, %v685
    %v802 = vpack.c.b16 %v690, %v688
    %v803 = vpack.c.b16 %v691, %v689
    %v804 = vpack.c.b16 %v694, %v692
    %v805 = vpack.c.b16 %v695, %v693
    %v806 = vpack.c.b16 %v698, %v696
    %v807 = vpack.c.b16 %v699, %v697
    %v808 = vpack.c.b16 %v702, %v700
    %v809 = vpack.c.b16 %v703, %v701
    %v810 = vpack.c.b16 %v706, %v704
    %v811 = vpack.c.b16 %v707, %v705
    %v812 = vpack.c.b16 %v710, %v708
    %v813 = vpack.c.b16 %v711, %v709
    %v814 = vpack.c.b16 %v714, %v712
    %v815 = vpack.c.b16 %v715, %v713
    %v816 = vpack.c.b16 %v718, %v716
    %v817 = vpack.c.b16 %v719, %v717
    %v818 = vpack.c.b16 %v722, %v720
    %v819 = vpack.c.b16 %v723, %v721
    %v820 = vpack.c.b16 %v726, %v724
    %v821 = vpack.c.b16 %v727, %v725
    %v822 = vpack.c.b16 %v730, %v728
    %v823 = vpack.c.b16 %v731, %v729
    %v824 = vpack.c.b16 %v734, %v732
    %v825 = vpack.c.b16 %v735, %v733
    %v826 = vpack.c.b16 %v738, %v736
    %v827 = vpack.c.b16 %v739, %v737
    %v828 = vpack.c.b16 %v742, %v740
    %v829 = vpack.c.b16 %v743, %v741
    %v830 = vpack.c.b16 %v746, %v744
    %v831 = vpack.c.b16 %v747, %v745
    %v832 = vpack.c.b16 %v750, %v748
    %v833 = vpack.c.b16 %v751, %v749
    %v834 = vpack.c.b16 %v754, %v752
    %v835 = vpack.c.b16 %v755, %v753
    %v836 = vpack.c.b16 %v758, %v756
    %v837 = vpack.c.b16 %v759, %v757
    %v838 = vpack.c.b16 %v762, %v760
    %v839 = vpack.c.b16 %v763, %v761
    %v840 = vpack.c.b16 %v766, %v764
    %v841 = vpack.c.b16 %v767, %v765
    %v842 = vpack.c.b16 %v770, %v768
    %v843 = vpack.c.b16 %v771, %v769
    %v844 = vpack.c.b16 %v774, %v772
    %v845 = vpack.c.b16 %v775, %v773
    %v846 = vpack.c.b16 %v778, %v776
    %v847 = vpack.c.b16 %v779, %v777
    %v848 = vpack.c.b16 %v782, %v780
    %v849 = vpack.c.b16 %v783, %v781
    %v850 = vpack.c.b16 %v786, %v784
    %v851 = vpack.c.b16 %v787, %v785
    %916 = vmatprep.subr.bf16.mxu0 %v789
    %917 = vmatpush1.bf16.msra.mxu0 %v788
    %918 = vmatprep.subr.bf16.mxu0 %v791
    %919 = vmatpush1.bf16.msra.mxu0 %v790
    %920 = vmatprep.subr.bf16.mxu0 %v793
    %921 = vmatpush1.bf16.msra.mxu0 %v792
    %922 = vmatprep.subr.bf16.mxu0 %v795
    %923 = vmatpush1.bf16.msra.mxu0 %v794
    %924 = vmatprep.subr.bf16.mxu0 %v797
    %925 = vmatpush1.bf16.msra.mxu0 %v796
    %926 = vmatprep.subr.bf16.mxu0 %v799
    %927 = vmatpush1.bf16.msra.mxu0 %v798
    %928 = vmatprep.subr.bf16.mxu0 %v801
    %929 = vmatpush1.bf16.msra.mxu0 %v800
    %930 = vmatprep.subr.bf16.mxu0 %v803
    %931 = vmatpush1.bf16.msra.mxu0 %v802
    %932 = vmatprep.subr.bf16.mxu0 %v805
    %933 = vmatpush1.bf16.msra.mxu0 %v804
    %934 = vmatprep.subr.bf16.mxu0 %v807
    %935 = vmatpush1.bf16.msra.mxu0 %v806
    %936 = vmatprep.subr.bf16.mxu0 %v809
    %937 = vmatpush1.bf16.msra.mxu0 %v808
    %938 = vmatprep.subr.bf16.mxu0 %v811
    %939 = vmatpush1.bf16.msra.mxu0 %v810
    %940 = vmatprep.subr.bf16.mxu0 %v813
    %941 = vmatpush1.bf16.msra.mxu0 %v812
    %942 = vmatprep.subr.bf16.mxu0 %v815
    %943 = vmatpush1.bf16.msra.mxu0 %v814
    %944 = vmatprep.subr.bf16.mxu0 %v817
    %945 = vmatpush1.bf16.msra.mxu0 %v816
    %946 = vmatprep.subr.bf16.mxu0 %v819
    %947 = vmatpush1.bf16.msra.mxu0 %v818
    %948 = vmatprep.mubr.bf16.mxu0 %v582
    %949 = vmatmul.mubr.bf16.gmra.mrb[0].mxu0 %v581
    %v950 = vpop.f32.mrb[0].mxu0
    %v951 = vadd.f32 %v589, %v950
    %v952 = vpop.f32.mrb[0].mxu0
    %v953 = vadd.f32 %v593, %v952
    %v954 = vpop.f32.mrb[0].mxu0
    %v955 = vadd.f32 %v589, %v954
    %v956 = vpop.f32.mrb[0].mxu0
    %v957 = vadd.f32 %v593, %v956
    %958 = vdwg.mxu0
    %959 = vmatprep.subr.bf16.mxu0 %v821
    %960 = vmatpush1.bf16.msra.mxu0 %v820
    %961 = vmatprep.subr.bf16.mxu0 %v823
    %962 = vmatpush1.bf16.msra.mxu0 %v822
    %963 = vmatprep.subr.bf16.mxu0 %v825
    %964 = vmatpush1.bf16.msra.mxu0 %v824
    %965 = vmatprep.subr.bf16.mxu0 %v827
    %966 = vmatpush1.bf16.msra.mxu0 %v826
    %967 = vmatprep.subr.bf16.mxu0 %v829
    %968 = vmatpush1.bf16.msra.mxu0 %v828
    %969 = vmatprep.subr.bf16.mxu0 %v831
    %970 = vmatpush1.bf16.msra.mxu0 %v830
    %971 = vmatprep.subr.bf16.mxu0 %v833
    %972 = vmatpush1.bf16.msra.mxu0 %v832
    %973 = vmatprep.subr.bf16.mxu0 %v835
    %974 = vmatpush1.bf16.msra.mxu0 %v834
    %975 = vmatprep.subr.bf16.mxu0 %v837
    %976 = vmatpush1.bf16.msra.mxu0 %v836
    %977 = vmatprep.subr.bf16.mxu0 %v839
    %978 = vmatpush1.bf16.msra.mxu0 %v838
    %979 = vmatprep.subr.bf16.mxu0 %v841
    %980 = vmatpush1.bf16.msra.mxu0 %v840
    %981 = vmatprep.subr.bf16.mxu0 %v843
    %982 = vmatpush1.bf16.msra.mxu0 %v842
    %983 = vmatprep.subr.bf16.mxu0 %v845
    %984 = vmatpush1.bf16.msra.mxu0 %v844
    %985 = vmatprep.subr.bf16.mxu0 %v847
    %986 = vmatpush1.bf16.msra.mxu0 %v846
    %987 = vmatprep.subr.bf16.mxu0 %v849
    %988 = vmatpush1.bf16.msra.mxu0 %v848
    %989 = vmatprep.subr.bf16.mxu0 %v851
    %990 = vmatpush1.bf16.msra.mxu0 %v850
    %991 = vmatprep.mubr.bf16.mxu0 %v584
    %992 = vmatmul.mubr.bf16.gmra.mrb[0].mxu0 %v583
    %v993 = vpop.f32.mrb[0].mxu0
    %v994 = vadd.f32 %v951, %v993
    %v995 = vpop.f32.mrb[0].mxu0
    %v996 = vadd.f32 %v953, %v995
    %v997 = vpop.f32.mrb[0].mxu0
    %v998 = vadd.f32 %v955, %v997
    %v999 = vpop.f32.mrb[0].mxu0
    %v1000 = vadd.f32 %v957, %v999
    %1001 = vdwg.mxu0
    %v1002 = vmax.f32 %v994, 0.0
    %v1003 = vmax.f32 %v996, 0.0
    %v1004 = vmax.f32 %v998, 0.0
    %v1005 = vmax.f32 %v1000, 0.0
    %v1006 = vld [vmem:[#allocation11] sm:$0xf]
    %v1007 = vld [vmem:[#allocation11 + $0x4] sm:$0xf]
    %v1008 = vld [vmem:[#allocation11 + $0x8] sm:$0xf]
    %v1009 = vld [vmem:[#allocation11 + $0xc] sm:$0xf]
    %v1010 = vld [vmem:[#allocation11 + $0x10] sm:$0xf]
    %v1011 = vld [vmem:[#allocation11 + $0x14] sm:$0xf]
    %v1012 = vld [vmem:[#allocation11 + $0x18] sm:$0xf]
    %v1013 = vld [vmem:[#allocation11 + $0x1c] sm:$0xf]
    %v1014 = vld [vmem:[#allocation11 + $0x20] sm:$0xf]
    %v1015 = vld [vmem:[#allocation11 + $0x24] sm:$0xf]
    %v1016 = vld [vmem:[#allocation11 + $0x28] sm:$0xf]
    %v1017 = vld [vmem:[#allocation11 + $0x2c] sm:$0xf]
    %v1018 = vld [vmem:[#allocation11 + $0x30] sm:$0xf]
    %v1019 = vld [vmem:[#allocation11 + $0x34] sm:$0xf]
    %v1020 = vld [vmem:[#allocation11 + $0x38] sm:$0xf]
    %v1021 = vld [vmem:[#allocation11 + $0x3c] sm:$0xf]
    %v1022 = vld [vmem:[#allocation11 + $0x40] sm:$0xf]
    %v1023 = vld [vmem:[#allocation11 + $0x44] sm:$0xf]
    %v1024 = vld [vmem:[#allocation11 + $0x48] sm:$0xf]
    %v1025 = vld [vmem:[#allocation11 + $0x4c] sm:$0xf]
    %v1026 = vld [vmem:[#allocation11 + $0x50] sm:$0xf]
    %v1027 = vld [vmem:[#allocation11 + $0x54] sm:$0xf]
    %v1028 = vld [vmem:[#allocation11 + $0x58] sm:$0xf]
    %v1029 = vld [vmem:[#allocation11 + $0x5c] sm:$0xf]
    %v1030 = vld [vmem:[#allocation11 + $0x60] sm:$0xf]
    %v1031 = vld [vmem:[#allocation11 + $0x64] sm:$0xf]
    %v1032 = vld [vmem:[#allocation11 + $0x68] sm:$0xf]
    %v1033 = vld [vmem:[#allocation11 + $0x6c] sm:$0xf]
    %v1034 = vld [vmem:[#allocation11 + $0x70] sm:$0xf]
    %v1035 = vld [vmem:[#allocation11 + $0x74] sm:$0xf]
    %v1036 = vld [vmem:[#allocation11 + $0x78] sm:$0xf]
    %v1037 = vld [vmem:[#allocation11 + $0x7c] sm:$0xf]
    %v1038 = vld [vmem:[%s8] sm:$0x1]
    %v1039 = vpack.c.bf16 %v1004, %v1002
    %v1040 = vpack.c.bf16 %v1005, %v1003
    %v1042 = vlaneseq
    %v1043 = vshrl.u32 %v1042, 7
    %v1044 = vsub.s32 0, %v1043
    %v1045 = vrot.slane %v1038, %v1044
    %v1079 = vunpack.c.l.b16 %v1006
    %v1080 = vunpack.c.l.b16 %v1007
    %v1081 = vunpack.c.l.b16 %v1008
    %v1082 = vunpack.c.l.b16 %v1009
    %v1083 = vunpack.c.l.b16 %v1010
    %v1084 = vunpack.c.l.b16 %v1011
    %v1085 = vunpack.c.l.b16 %v1012
    %v1086 = vunpack.c.l.b16 %v1013
    %v1087 = vunpack.c.l.b16 %v1014
    %v1088 = vunpack.c.l.b16 %v1015
    %v1089 = vunpack.c.l.b16 %v1016
    %v1090 = vunpack.c.l.b16 %v1017
    %v1091 = vunpack.c.l.b16 %v1018
    %v1092 = vunpack.c.l.b16 %v1019
    %v1093 = vunpack.c.l.b16 %v1020
    %v1094 = vunpack.c.l.b16 %v1021
    %v1095 = vunpack.c.l.b16 %v1022
    %v1096 = vunpack.c.l.b16 %v1023
    %v1097 = vunpack.c.l.b16 %v1024
    %v1098 = vunpack.c.l.b16 %v1025
    %v1099 = vunpack.c.l.b16 %v1026
    %v1100 = vunpack.c.l.b16 %v1027
    %v1101 = vunpack.c.l.b16 %v1028
    %v1102 = vunpack.c.l.b16 %v1029
    %v1103 = vunpack.c.l.b16 %v1030
    %v1104 = vunpack.c.l.b16 %v1031
    %v1105 = vunpack.c.l.b16 %v1032
    %v1106 = vunpack.c.l.b16 %v1033
    %v1107 = vunpack.c.l.b16 %v1034
    %v1108 = vunpack.c.l.b16 %v1035
    %v1109 = vunpack.c.l.b16 %v1036
    %v1110 = vunpack.c.l.b16 %v1037
    %v1111 = vpack.c.b16 %v1080, %v1079
    %v1112 = vpack.c.b16 %v1082, %v1081
    %v1113 = vpack.c.b16 %v1084, %v1083
    %v1114 = vpack.c.b16 %v1086, %v1085
    %v1115 = vpack.c.b16 %v1088, %v1087
    %v1116 = vpack.c.b16 %v1090, %v1089
    %v1117 = vpack.c.b16 %v1092, %v1091
    %v1118 = vpack.c.b16 %v1094, %v1093
    %v1119 = vpack.c.b16 %v1096, %v1095
    %v1120 = vpack.c.b16 %v1098, %v1097
    %v1121 = vpack.c.b16 %v1100, %v1099
    %v1122 = vpack.c.b16 %v1102, %v1101
    %v1123 = vpack.c.b16 %v1104, %v1103
    %v1124 = vpack.c.b16 %v1106, %v1105
    %v1125 = vpack.c.b16 %v1108, %v1107
    %v1126 = vpack.c.b16 %v1110, %v1109
    %1143 = vmatprep.subr.bf16.mxu0 0
    %1144 = vmatpush1.bf16.msra.mxu0 %v1111
    %1145 = vmatprep.subr.bf16.mxu0 0
    %1146 = vmatpush1.bf16.msra.mxu0 %v1112
    %1147 = vmatprep.subr.bf16.mxu0 0
    %1148 = vmatpush1.bf16.msra.mxu0 %v1113
    %1149 = vmatprep.subr.bf16.mxu0 0
    %1150 = vmatpush1.bf16.msra.mxu0 %v1114
    %1151 = vmatprep.subr.bf16.mxu0 0
    %1152 = vmatpush1.bf16.msra.mxu0 %v1115
    %1153 = vmatprep.subr.bf16.mxu0 0
    %1154 = vmatpush1.bf16.msra.mxu0 %v1116
    %1155 = vmatprep.subr.bf16.mxu0 0
    %1156 = vmatpush1.bf16.msra.mxu0 %v1117
    %1157 = vmatprep.subr.bf16.mxu0 0
    %1158 = vmatpush1.bf16.msra.mxu0 %v1118
    %1159 = vmatprep.subr.bf16.mxu0 0
    %1160 = vmatpush1.bf16.msra.mxu0 %v1119
    %1161 = vmatprep.subr.bf16.mxu0 0
    %1162 = vmatpush1.bf16.msra.mxu0 %v1120
    %1163 = vmatprep.subr.bf16.mxu0 0
    %1164 = vmatpush1.bf16.msra.mxu0 %v1121
    %1165 = vmatprep.subr.bf16.mxu0 0
    %1166 = vmatpush1.bf16.msra.mxu0 %v1122
    %1167 = vmatprep.subr.bf16.mxu0 0
    %1168 = vmatpush1.bf16.msra.mxu0 %v1123
    %1169 = vmatprep.subr.bf16.mxu0 0
    %1170 = vmatpush1.bf16.msra.mxu0 %v1124
    %1171 = vmatprep.subr.bf16.mxu0 0
    %1172 = vmatpush1.bf16.msra.mxu0 %v1125
    %1173 = vmatprep.subr.bf16.mxu0 0
    %1174 = vmatpush1.bf16.msra.mxu0 %v1126
    %1175 = vmatprep.mubr.bf16.mxu0 %v1040
    %1176 = vmatmul.mubr.bf16.gmra.mrb[0].mxu0 %v1039
    %v1177 = vpop.f32.mrb[0].mxu0
    %v1178 = vadd.f32 %v1045, %v1177
    %v1179 = vpop.f32.mrb[0].mxu0
    %v1180 = vpop.f32.mrb[0].mxu0
    %v1181 = vadd.f32 %v1045, %v1180
    %v1182 = vpop.f32.mrb[0].mxu0
    %1183 = vdwg.mxu0
    %v1184 = vmax.f32 %v1178, 0.0
    %v1185 = vmax.f32 %v1181, 0.0
    %v1186 = vld [vmem:[#allocation12] sm:$0xf]
    %v1187 = vld [vmem:[#allocation12 + $0x4] sm:$0xf]
    %v1188 = vld [vmem:[#allocation12 + $0x8] sm:$0xf]
    %v1189 = vld [vmem:[#allocation12 + $0xc] sm:$0xf]
    %v1190 = vld [vmem:[#allocation12 + $0x10] sm:$0xf]
    %v1191 = vld [vmem:[#allocation12 + $0x14] sm:$0xf]
    %v1192 = vld [vmem:[#allocation12 + $0x18] sm:$0xf]
    %v1193 = vld [vmem:[#allocation12 + $0x1c] sm:$0xf]
    %v1194 = vld [vmem:[#allocation12 + $0x20] sm:$0xf]
    %v1195 = vld [vmem:[#allocation12 + $0x24] sm:$0xf]
    %v1196 = vld [vmem:[#allocation12 + $0x28] sm:$0xf]
    %v1197 = vld [vmem:[#allocation12 + $0x2c] sm:$0xf]
    %v1198 = vld [vmem:[#allocation12 + $0x30] sm:$0xf]
    %v1199 = vld [vmem:[#allocation12 + $0x34] sm:$0xf]
    %v1200 = vld [vmem:[#allocation12 + $0x38] sm:$0xf]
    %v1201 = vld [vmem:[#allocation12 + $0x3c] sm:$0xf]
    %v1202 = vld [vmem:[%s10] sm:$0x1]
    %v1203 = vpack.c.bf16 %v1185, %v1184
    %v1205 = vlaneseq
    %v1206 = vshrl.u32 %v1205, 7
    %v1207 = vsub.s32 0, %v1206
    %v1208 = vrot.slane %v1202, %v1207
    %v1226 = vunpack.c.l.b16 %v1186
    %v1227 = vunpack.c.l.b16 %v1187
    %v1228 = vunpack.c.l.b16 %v1188
    %v1229 = vunpack.c.l.b16 %v1189
    %v1230 = vunpack.c.l.b16 %v1190
    %v1231 = vunpack.c.l.b16 %v1191
    %v1232 = vunpack.c.l.b16 %v1192
    %v1233 = vunpack.c.l.b16 %v1193
    %v1234 = vunpack.c.l.b16 %v1194
    %v1235 = vunpack.c.l.b16 %v1195
    %v1236 = vunpack.c.l.b16 %v1196
    %v1237 = vunpack.c.l.b16 %v1197
    %v1238 = vunpack.c.l.b16 %v1198
    %v1239 = vunpack.c.l.b16 %v1199
    %v1240 = vunpack.c.l.b16 %v1200
    %v1241 = vunpack.c.l.b16 %v1201
    %v1242 = vpack.c.b16 %v1227, %v1226
    %v1243 = vpack.c.b16 %v1229, %v1228
    %v1244 = vpack.c.b16 %v1231, %v1230
    %v1245 = vpack.c.b16 %v1233, %v1232
    %v1246 = vpack.c.b16 %v1235, %v1234
    %v1247 = vpack.c.b16 %v1237, %v1236
    %v1248 = vpack.c.b16 %v1239, %v1238
    %v1249 = vpack.c.b16 %v1241, %v1240
    %1258 = vmatprep.subr.bf16.mxu0 0
    %1259 = vmatpush1.bf16.msra.mxu0 %v1242
    %1260 = vmatprep.subr.bf16.mxu0 0
    %1261 = vmatpush1.bf16.msra.mxu0 %v1243
    %1262 = vmatprep.subr.bf16.mxu0 0
    %1263 = vmatpush1.bf16.msra.mxu0 %v1244
    %1264 = vmatprep.subr.bf16.mxu0 0
    %1265 = vmatpush1.bf16.msra.mxu0 %v1245
    %1266 = vmatprep.subr.bf16.mxu0 0
    %1267 = vmatpush1.bf16.msra.mxu0 %v1246
    %1268 = vmatprep.subr.bf16.mxu0 0
    %1269 = vmatpush1.bf16.msra.mxu0 %v1247
    %1270 = vmatprep.subr.bf16.mxu0 0
    %1271 = vmatpush1.bf16.msra.mxu0 %v1248
    %1272 = vmatprep.subr.bf16.mxu0 0
    %1273 = vmatpush1.bf16.msra.mxu0 %v1249
    %1274 = vmatprep.subr.bf16.mxu0 0
    %1275 = vmatpush1.bf16.msra.mxu0 0
    %1276 = vmatprep.subr.bf16.mxu0 0
    %1277 = vmatpush1.bf16.msra.mxu0 0
    %1278 = vmatprep.subr.bf16.mxu0 0
    %1279 = vmatpush1.bf16.msra.mxu0 0
    %1280 = vmatprep.subr.bf16.mxu0 0
    %1281 = vmatpush1.bf16.msra.mxu0 0
    %1282 = vmatprep.subr.bf16.mxu0 0
    %1283 = vmatpush1.bf16.msra.mxu0 0
    %1284 = vmatprep.subr.bf16.mxu0 0
    %1285 = vmatpush1.bf16.msra.mxu0 0
    %1286 = vmatprep.subr.bf16.mxu0 0
    %1287 = vmatpush1.bf16.msra.mxu0 0
    %1288 = vmatprep.subr.bf16.mxu0 0
    %1289 = vmatpush1.bf16.msra.mxu0 0
    %1290 = vmatprep.mubr.bf16.mxu0 0
    %1291 = vmatmul.mubr.bf16.gmra.mrb[0].mxu0 %v1203
    %v1292 = vpop.f32.mrb[0].mxu0
    %v1293 = vadd.f32 %v1208, %v1292
    %v1294 = vpop.f32.mrb[0].mxu0
    %v1295 = vpop.f32.mrb[0].mxu0
    %v1296 = vadd.f32 %v1208, %v1295
    %v1297 = vpop.f32.mrb[0].mxu0
    %1298 = vdwg.mxu0
    %v1299 = vmax.f32 %v1293, 0.0
    %v1300 = vmax.f32 %v1296, 0.0
    %v1301 = vld [vmem:[%s11] sm:$0x1]
    %v1302 = vld [vmem:[#allocation2] sm:$0x1]
    %v1304 = vlaneseq
    %v1305 = vshrl.u32 %v1304, 7
    %v1306 = vsub.s32 0, %v1305
    %v1307 = vrot.slane %v1301, %v1306
    %v1309 = vmul.f32 %v1299, %v1307
    %v1310 = vmul.f32 %v1300, %v1307
    %1311 = vadd.xlane.f32.xlu0 %v1309
    %v1312 = vpop.xlane.xlu0 %1311
    %1313 = vadd.xlane.f32.xlu0 %v1310
    %v1314 = vpop.xlane.xlu0 %1313
    %v1316 = vlaneseq
    %v1317 = vshrl.u32 %v1316, 7
    %v1318 = vsub.s32 0, %v1317
    %v1319 = vrot.slane %v1302, %v1318
    %v1321 = vadd.f32 %v1312, %v1319
    %v1322 = vadd.f32 %v1314, %v1319
    %v1323 = vsub.f32 0.0, %v1321
    %v1324 = vsub.f32 0.0, %v1322
    %v1325 = vmul.f32 %v1323, 1.442695
    %v1326 = vpow.pop %v1325
    %v1327 = vmul.f32 %v1324, 1.442695
    %v1328 = vpow.pop %v1327
    %v1329 = vadd.f32 %v1326, 1.0
    %v1330 = vadd.f32 %v1328, 1.0
    %v1331 = vrcp.pop %v1329
    %v1332 = vrcp.pop %v1330
    %1333 = vxpose.xlu0.b32.start [1/16] %v1331, 128
    %1334 = vxpose.xlu0.b32.cont [2/16] %v1332, 128
    %1335 = vxpose.xlu0.b32.cont [3/16] 0.0, 128
    %1336 = vxpose.xlu0.b32.cont [4/16] 0.0, 128
    %1337 = vxpose.xlu0.b32.cont [5/16] 0.0, 128
    %1338 = vxpose.xlu0.b32.cont [6/16] 0.0, 128
    %1339 = vxpose.xlu0.b32.cont [7/16] 0.0, 128
    %1340 = vxpose.xlu0.b32.cont [8/16] 0.0, 128
    %1341 = vxpose.xlu0.b32.cont [9/16] 0.0, 128
    %1342 = vxpose.xlu0.b32.cont [10/16] 0.0, 128
    %1343 = vxpose.xlu0.b32.cont [11/16] 0.0, 128
    %1344 = vxpose.xlu0.b32.cont [12/16] 0.0, 128
    %1345 = vxpose.xlu0.b32.cont [13/16] 0.0, 128
    %1346 = vxpose.xlu0.b32.cont [14/16] 0.0, 128
    %1347 = vxpose.xlu0.b32.cont [15/16] 0.0, 128
    %1348 = vxpose.xlu0.b32.end [16/16] 0.0, 128
    %v1349 = vpop.trf.xlu0
    %v1350 = vpop.trf.xlu0
    %v1351 = vpop.trf.xlu0
    %v1352 = vpop.trf.xlu0
    %v1353 = vpop.trf.xlu0
    %v1354 = vpop.trf.xlu0
    %v1355 = vpop.trf.xlu0
    %v1356 = vpop.trf.xlu0
    %v1357 = vpop.trf.xlu0
    %v1358 = vpop.trf.xlu0
    %v1359 = vpop.trf.xlu0
    %v1360 = vpop.trf.xlu0
    %v1361 = vpop.trf.xlu0
    %v1362 = vpop.trf.xlu0
    %v1363 = vpop.trf.xlu0
    %v1364 = vpop.trf.xlu0
    %vm1365 = vcmask 122880
    %1366 = vst.msk [vmem:[#allocation14] sm:$0x1] %vm1365, %v1349
    // Predicated region
    $region78: #{tpu_custom_call.1} parent=1 // pred_check
      _
    $region79: #{tpu_custom_call.1} parent=1 // pred_check_branch
      %1368 = sbr.rel (0) target = $region81
    $region80: #{tpu_custom_call.1} parent=1 // pred_region
      %s1370 = ssub.s32 16, 16
      %1371 = vsyncadd [#allocation5], %s1370
      %s1373 = sshll.u32 [#allocation14], 4
      %s1374 = int_to_ptr.vmem [resolvable:$true] %s1373
      %1376 = dma.vmem_to_hbm [thread:$0]  %s1374, 16, %s13, [#allocation5]
    $region81: #{tpu_custom_call.1} parent=1 // pred_fallthru
      _
    // Predicated region
    $region82: #{tpu_custom_call.1} parent=1 // pred_check
      _
    $region83: #{tpu_custom_call.1} parent=1 // pred_check_branch
      %1378 = sbr.rel (0) target = $region85
    $region84: #{tpu_custom_call.1} parent=1 // pred_region
      %1379 = dma.done [#allocation5], 16
    $region85: #{tpu_custom_call.1} parent=1 // pred_fallthru
      _
    %1380 = vsyncpa [#allocation4], 1
    %1381 = vsyncpa [#allocation7], 1
    %1382 = vsyncpa [#allocation10], 1
    %1383 = vsyncpa [#allocation13], 1
    %1384 = vsyncpa [#allocation5], 1

</llo_original>
